<compile_context>
chip_gen: v7x
topology: tpu7x:2x2x1
jax: 0.10.0
libtpu: 0.0.40
codegen_flags: <defaults>
</compile_context>

<pallas_src>
import functools
import math

import jax
import jax.numpy as jnp
from jax.experimental import pallas as pl
from jax.experimental.pallas import tpu as pltpu


def _torch_pads_to_per_dim(pads, ndim):
    """Convert torch F.pad `pads` list to per-dim (pad_before, pad_after)."""
    pads = [int(p) for p in pads]
    if len(pads) % 2 != 0:
        raise ValueError(f"pads must have an even length, got {len(pads)}")
    n_pairs = len(pads) // 2
    if n_pairs > ndim:
        raise ValueError(
            f"pads specifies {n_pairs} dims but the input only has {ndim} dims")
    pad_before = [0] * ndim
    pad_after = [0] * ndim
    for k in range(n_pairs):
        dim = ndim - 1 - k
        pad_before[dim] = pads[2 * k]
        pad_after[dim] = pads[2 * k + 1]
    return pad_before, pad_after


@functools.lru_cache(maxsize=None)
def _vmem_pair_budget():
    """Per-grid-step (input tile + output tile) byte budget, generation-aware.

    BlockSpec double-buffers each operand, so peak pipeline VMEM ~= 2x this.
    We stay inside each generation's *default* scoped-VMEM limit so
    vmem_limit_bytes never needs raising:
        v5e : 16 MiB scoped default            ->  6 MiB budget (~12 MiB peak)
        v6e : 32 MiB scoped / 128 MiB physical -> 12 MiB budget (~24 MiB peak)
        v7x : 32 MiB scoped /  64 MiB physical -> 12 MiB budget (~24 MiB peak)
    """
    kind = ""
    try:
        kind = jax.devices()[0].device_kind.lower()
    except Exception:
        pass
    try:
        # v7x-class chips have only 64 MiB physical VMEM per TensorCore; never
        # size tiles as if they had a v5e/v6e-sized (128 MiB) VMEM.
        if int(pltpu.get_tpu_info().vmem_capacity_bytes) <= (64 << 20):
            return 12 << 20
    except Exception:
        pass
    if "v6" in kind or "v7" in kind:
        return 12 << 20
    return 6 << 20  # v5e / unknown: conservative


def _choose_block_rows(n_rows, max_rows):
    """Block size along the collapsed *sublane* row axis of a 2-D block.

    Must be == n_rows (full extent) or a multiple of 8 (TPU (8,128) rule).
    Prefer <= ceil(n_rows/2) so the "parallel" grid has >= 2 steps (v7x has
    two TensorCores); cap by the VMEM pair budget (max_rows).
    Returns None if no legal block fits the budget.
    """
    if n_rows <= 8:
        return n_rows if n_rows <= max_rows else None
    target = min(max_rows, -(-n_rows // 2))
    tr = (target // 8) * 8
    if tr >= 8:
        return min(tr, n_rows)
    # Budget allows fewer than 8 rows: only the full extent is a legal shape.
    return n_rows if n_rows <= max_rows else None


def _pad_block_kernel(x_ref, o_ref, *, offsets, constant_value):
    """Pad one block: memset the whole output tile once, overwrite interior.

    One full-extent, lane/sublane-dense (unmasked) store of the constant,
    then one store of the input into its interior window.  No concatenate
    temp, no narrow masked border stores; the extra VMEM writes of the
    interior are hidden under the HBM DMA (kernel is bandwidth-bound).
    """
    o_ref[...] = jnp.full(o_ref.shape, constant_value, dtype=o_ref.dtype)
    interior = tuple(slice(off, off + n) for off, n in zip(offsets, x_ref.shape))
    o_ref[interior] = x_ref[...]


class OnnxPadStaticPallas:
    """Pallas TPU equivalent of onnx2torch OnnxPadStatic (constant mode)."""

    def __init__(self, pads, mode="constant", constant_value=0.0, *,
                 min_pallas_bytes=1 << 20, block_rows=None):
        if mode != "constant":
            # TODO(synk): reflect / replicate (edge) pad modes not implemented.
            raise NotImplementedError("Only 'constant' pad mode is implemented.")
        self.pads = list(pads)
        self.mode = mode
        # Keep the original python scalar; it is cast to the tensor dtype in
        # the kernel (a float constant on an integer tensor truncates, matching
        # torch's cast-to-dtype fill behaviour).
        self.constant_value = constant_value
        self.min_pallas_bytes = int(min_pallas_bytes)
        self.block_rows = block_rows

    # ------------------------------------------------------------------ utils
    def _jnp_pad(self, x, pad_before, pad_after):
        cv = jnp.asarray(self.constant_value, dtype=x.dtype)
        return jnp.pad(x, tuple(zip(pad_before, pad_after)),
                       mode="constant", constant_values=cv)

    # ------------------------------------------------- path A: single dim pad
    def _pad_single_dim_pallas(self, x, d, pad_before, pad_after, budget):
        """Exactly one dim padded: flatten trailing dims into it and run a 2-D
        last-dim pad tiled over collapsed rows.  Returns None if it cannot be
        tiled within the VMEM budget."""
        shape = x.shape
        itemsize = x.dtype.itemsize
        trail = int(math.prod(shape[d + 1:]))
        rows = int(math.prod(shape[:d]))
        l_in = int(math.prod(shape[d:]))
        before = pad_before[d] * trail
        after = pad_after[d] * trail
        l_out = l_in + before + after

        bytes_per_row = (l_in + l_out) * itemsize
        if bytes_per_row > budget:
            # TODO(synk): tile along the padded dim itself for gigantic rows.
            return None
        max_rows = max(1, budget // bytes_per_row)
        if self.block_rows is not None:
            max_rows = min(max_rows, max(1, int(self.block_rows)))
        tr = _choose_block_rows(rows, max_rows)
        if tr is None:
            return None

        x2 = x.reshape(rows, l_in)
        kernel = functools.partial(
            _pad_block_kernel, offsets=(0, before),
            constant_value=self.constant_value)
        out2 = pl.pallas_call(
            kernel,
            out_shape=jax.ShapeDtypeStruct((rows, l_out), x.dtype),
            grid=(pl.cdiv(rows, tr),),
            # Lane dims are full array extents; sublane block dim `tr` is a
            # multiple of 8 or the full extent.  Default depth-2 pipelining.
            in_specs=[pl.BlockSpec((tr, l_in), lambda i: (i, 0))],
            out_specs=pl.BlockSpec((tr, l_out), lambda i: (i, 0)),
            compiler_params=pltpu.CompilerParams(
                dimension_semantics=("parallel",)),
        )(x2)

        new_shape = (shape[:d]
                     + (shape[d] + pad_before[d] + pad_after[d],)
                     + shape[d + 1:])
        return out2.reshape(new_shape)

    # -------------------------------------------------- path B: H and W pads
    def _pad_hw_pallas(self, x, pad_before, pad_after, budget):
        """Pads confined to the last two dims: full (H, W) plane per block,
        grid over collapsed leading dims.  Returns None if one plane does not
        fit the VMEM budget."""
        itemsize = x.dtype.itemsize
        h_in, w_in = x.shape[-2], x.shape[-1]
        ph0, ph1 = pad_before[-2], pad_after[-2]
        pw0, pw1 = pad_before[-1], pad_after[-1]
        h_out = h_in + ph0 + ph1
        w_out = w_in + pw0 + pw1

        bytes_per_plane = (h_in * w_in + h_out * w_out) * itemsize
        if bytes_per_plane > budget:
            # TODO(synk): H-tiling for huge planes padded on both H and W (the
            # ph0 output offset makes blocks misaligned); use XLA pad instead.
            return None

        b = int(math.prod(x.shape[:-2]))
        max_planes = max(1, budget // bytes_per_plane)
        tb = max(1, min(b, max_planes))
        if self.block_rows is not None:
            # Clamp the user override to the VMEM budget.
            tb = max(1, min(tb, int(self.block_rows)))
        elif b >= 2:
            # >= 2 grid steps so both v7x TensorCores get work on the
            # "parallel" axis.
            tb = min(tb, -(-b // 2))

        x3 = x.reshape(b, h_in, w_in)
        kernel = functools.partial(
            _pad_block_kernel, offsets=(0, ph0, pw0),
            constant_value=self.constant_value)
        out3 = pl.pallas_call(
            kernel,
            out_shape=jax.ShapeDtypeStruct((b, h_out, w_out), x.dtype),
            grid=(pl.cdiv(b, tb),),
            # Last two block dims == full array extents (satisfies the
            # (8,128)-or-full-extent rule); only the collapsed leading axis is
            # tiled.  A ragged last block is handled by Pallas (OOB output
            # rows are discarded on writeback).
            in_specs=[pl.BlockSpec((tb, h_in, w_in), lambda i: (i, 0, 0))],
            out_specs=pl.BlockSpec((tb, h_out, w_out), lambda i: (i, 0, 0)),
            compiler_params=pltpu.CompilerParams(
                dimension_semantics=("parallel",)),
        )(x3)
        return out3.reshape(x.shape[:-2] + (h_out, w_out))

    # ---------------------------------------------------------------- forward
    def __call__(self, x):
        ndim = x.ndim
        pad_before, pad_after = _torch_pads_to_per_dim(self.pads, ndim)

        # Negative pads mean cropping (torch.nn.functional.pad semantics).
        if any(p < 0 for p in pad_before + pad_after):
            starts = [max(0, -b) for b in pad_before]
            limits = [s - max(0, -a) for s, a in zip(x.shape, pad_after)]
            if any(lim < st for st, lim in zip(starts, limits)):
                raise ValueError("negative pads crop more than the dim size")
            x = jax.lax.slice(x, starts, limits)
            pad_before = [max(0, b) for b in pad_before]
            pad_after = [max(0, a) for a in pad_after]

        if all(b == 0 and a == 0 for b, a in zip(pad_before, pad_after)):
            return x

        total_bytes = x.size * x.dtype.itemsize
        use_pallas = x.size > 0 and total_bytes >= self.min_pallas_bytes
        budget = _vmem_pair_budget()

        padded_dims = [d for d in range(ndim)
                       if pad_before[d] != 0 or pad_after[d] != 0]

        if use_pallas:
            if len(padded_dims) == 1:
                out = self._pad_single_dim_pallas(
                    x, padded_dims[0], pad_before, pad_after, budget)
                if out is not None:
                    return out
            elif ndim >= 2 and set(padded_dims) <= {ndim - 2, ndim - 1}:
                out = self._pad_hw_pallas(x, pad_before, pad_after, budget)
                if out is not None:
                    return out

        # Fallback: tiny inputs (pallas_call launch overhead dominates), pads
        # spanning multiple leading dims, empty tensors, or blocks that do not
        # fit the VMEM budget.
        # TODO(synk): Pallas path for multi-dim pads that include leading
        # (N/C) dims and for H+W-padded planes too large for one VMEM block.
        return self._jnp_pad(x, pad_before, pad_after)


if __name__ == "__main__":
    key = jax.random.PRNGKey(0)
    # NCHW input, small shapes.
    x = jax.random.normal(key, (2, 4, 16, 16), dtype=jnp.float32)
    cv = 1.5

    # 1) H+W pads (path B), Pallas path forced even for this tiny input.
    pads = [1, 2, 3, 1]   # W: (left=1, right=2), H: (top=3, bottom=1)
    ref = jnp.pad(x, ((0, 0), (0, 0), (3, 1), (1, 2)),
                  mode="constant", constant_values=cv)
    mod = OnnxPadStaticPallas(pads, "constant", cv, min_pallas_bytes=0)
    out = jax.block_until_ready(mod(x))
    assert out.shape == (2, 4, 20, 19), out.shape
    assert out.dtype == x.dtype
    assert bool(jnp.allclose(out, ref)), "mismatch vs jnp.pad reference (H+W)"

    # 2) Multi-block grid with a ragged last block (b=8, block_rows=3 -> 3,3,2).
    mod_blk = OnnxPadStaticPallas(pads, "constant", cv,
                                  min_pallas_bytes=0, block_rows=3)
    out2 = jax.block_until_ready(mod_blk(x))
    assert bool(jnp.allclose(out2, ref)), "mismatch with ragged tiled grid"

    # 3) Negative pad (crop) on the left of W, per torch F.pad semantics.
    mod_neg = OnnxPadStaticPallas([-1, 2, 3, 1], "constant", cv,
                                  min_pallas_bytes=0)
    out3 = jax.block_until_ready(mod_neg(x))
    ref3 = jnp.pad(x[..., 1:], ((0, 0), (0, 0), (3, 1), (0, 2)),
                   mode="constant", constant_values=cv)
    assert out3.shape == (2, 4, 20, 17), out3.shape
    assert bool(jnp.allclose(out3, ref3)), "mismatch with negative pads"

    # 4) W-only pads -> single-padded-dim row path (path A).
    mod_w = OnnxPadStaticPallas([2, 3], "constant", cv, min_pallas_bytes=0)
    out4 = jax.block_until_ready(mod_w(x))
    ref4 = jnp.pad(x, ((0, 0), (0, 0), (0, 0), (2, 3)),
                   mode="constant", constant_values=cv)
    assert out4.shape == (2, 4, 16, 21), out4.shape
    assert bool(jnp.allclose(out4, ref4)), "mismatch on W-only pad path"

    # 5) H-only pads -> single-padded-dim path via trailing-dim flatten.
    mod_h = OnnxPadStaticPallas([0, 0, 3, 1], "constant", cv,
                                min_pallas_bytes=0)
    out5 = jax.block_until_ready(mod_h(x))
    ref5 = jnp.pad(x, ((0, 0), (0, 0), (3, 1), (0, 0)),
                   mode="constant", constant_values=cv)
    assert out5.shape == (2, 4, 20, 16), out5.shape
    assert bool(jnp.allclose(out5, ref5)), "mismatch on H-only pad path"

    # 6) Default fast path for tiny inputs (jnp.pad fallback), same semantics.
    mod_fast = OnnxPadStaticPallas(pads, "constant", cv)
    out6 = jax.block_until_ready(mod_fast(x))
    assert bool(jnp.allclose(out6, ref)), "mismatch on fast path"

    print("KERNEL_OK")
</pallas_src>

<mosaic_0001>
module attributes {stable_mosaic.version = 11 : i64} {
  func.func @_pad_block_kernel(%arg0: i32, %arg1: memref<4x16x16xf32, #tpu.memory_space<vmem>>, %arg2: memref<4x20x19xf32, #tpu.memory_space<vmem>>) attributes {dimension_semantics = [#tpu.dimension_semantics<parallel>], iteration_bounds = array<i64: 2>, scalar_prefetch = 0 : i64, scratch_operands = 0 : i64, tpu.core_type = #tpu.core_type<tc>, window_params = [{transform_indices = @transform_0, window_bounds = array<i64: 4, 16, 16>}, {transform_indices = @transform_1, window_bounds = array<i64: 4, 20, 19>}]} {
    %cst = arith.constant 1.500000e+00 : f32
    %0 = vector.broadcast %cst : f32 to vector<4x20x19xf32>
    %c0 = arith.constant 0 : index
    %c0_0 = arith.constant 0 : index
    %c0_1 = arith.constant 0 : index
    %1 = vector.load %arg2[%c0, %c0_0, %c0_1] : memref<4x20x19xf32, #tpu.memory_space<vmem>>, vector<4x20x19xf32>
    tpu.vector_store %arg2[%c0, %c0_0, %c0_1], %0 {strides = array<i32>} : memref<4x20x19xf32, #tpu.memory_space<vmem>>, vector<4x20x19xf32>,
    %c0_2 = arith.constant 0 : index
    %c0_3 = arith.constant 0 : index
    %c0_4 = arith.constant 0 : index
    %2 = vector.load %arg1[%c0_2, %c0_3, %c0_4] : memref<4x16x16xf32, #tpu.memory_space<vmem>>, vector<4x16x16xf32>
    %c0_5 = arith.constant 0 : index
    %c3 = arith.constant 3 : index
    %c1 = arith.constant 1 : index
    %3 = vector.load %arg2[%c0_5, %c3, %c1] : memref<4x20x19xf32, #tpu.memory_space<vmem>>, vector<4x16x16xf32>
    tpu.vector_store %arg2[%c0_5, %c3, %c1], %2 {strides = array<i32>} : memref<4x20x19xf32, #tpu.memory_space<vmem>>, vector<4x16x16xf32>,
    return
  }
  func.func @transform_0(%arg0: i32) -> (i32, i32, i32) {
    %c0_i32 = arith.constant 0 : i32
    %c0_i32_0 = arith.constant 0 : i32
    %c0_i32_1 = arith.constant 0 : i32
    return %arg0, %c0_i32, %c0_i32_0 : i32, i32, i32
  }
  func.func @transform_1(%arg0: i32) -> (i32, i32, i32) {
    %c0_i32 = arith.constant 0 : i32
    %c0_i32_0 = arith.constant 0 : i32
    %c0_i32_1 = arith.constant 0 : i32
    return %arg0, %c0_i32, %c0_i32_0 : i32, i32, i32
  }
}

</mosaic_0001>

<llo_original>
// kernel: tpu_custom_call.1
$region0: #{tpu_custom_call.1}
  #allocation0 [shape = 'u32[]', space=smem, size = 0x4, offset = 0x4, fixed_abs, tag = 'smem constant byte address 0x4 - core index']
  #allocation1 [shape = 'u32[144,128]{1,0:T(1,128)}', space=vmem, size = 0x12000, scoped, tag = 'internal scratch']
  %s0 = inlined_call_operand.hbm [shape: f32[8,16,16], index: 0, kind: input, shape index: {}]
  %s1 = inlined_call_operand.vmem [shape: f32[8,20,19], index: 1, kind: output, shape index: {}]
  %s2 = sld [smem:[#allocation0]]
  $region41: #{tpu_custom_call.1} parent=0
    _
  %s4 = ssub.s32 1, %s2
  %s5 = scalar_select 0, %s4, %s2
  $region1: #{tpu_custom_call.1} parent=0
    #allocation2 [shape = 'u8[65536]{0}', space=vmem, size = 0x10000, scoped, tag = 'input window, operand 0']
    #allocation3 [shape = 's32[2]{0}', space=sflag, size = 0x8, scoped, tag = 'scoped memory for tpu_custom_call.1']
    %6 = vsyncpa [#allocation3], 0
    %s7 = scalar_lea.sflag [#allocation3], 1
    %8 = vsyncpa %s7, 0
    loop: start=0, step=1, limit=4
    $region2: #{tpu_custom_call.1} parent=1 // loop_pre_header
      _
    $region3: #{tpu_custom_call.1} parent=1 // loop_header
      %s10 = sphi 0, %s14
      %p11 = scmp.ge.s32.totalorder %s10, 4
      %s20 = sphi 0, %s22
      %s23 = sphi 0, %s20
      %s24 = sphi 0, %s23
      %s40 = sphi 0, %s24
      %s46 = sphi 0, %s48
      %s49 = sphi 0, %s46
      %s50 = sphi 0, %s49
      %s66 = sphi 0, %s50
    $region4: #{tpu_custom_call.1} parent=1 // loop_header_branch
      %13 = sbr.rel (%p11) target = $region8
    $region5: #{tpu_custom_call.1} parent=1 // loop_body
      %s15 = ssub.s32 %s10, 1
      %s16 = ssub.s32 %s10, 2
      %s17 = sadd.s32 %s10, 1
      %s18 = ssub.s32 %s10, %s17
      %p19 = scmp.eq.s32.totalorder %s18, 0
      %s21 = sadd.s32 %s20, 1
      %s22 = scalar_select %p19, %s20, %s21
      %p25 = pneg %p19
      %p26 = scmp.eq.s32.totalorder %s10, 1
      %p27 = por %p25, %p26
      %p28 = scmp.ne.s32.totalorder %s20, %s23
      %p29 = scmp.eq.s32.totalorder %s10, 0
      %p30 = por %p28, %p29
      %p31 = scmp.ne.s32.totalorder %s20, %s23
      %p32 = scmp.eq.s32.totalorder %s15, 1
      %p33 = por %p31, %p32
      %p34 = scmp.ne.s32.totalorder %s23, %s24
      %p35 = scmp.eq.s32.totalorder %s15, 0
      %p36 = por %p34, %p35
      %p37 = scmp.ne.s32.totalorder %s23, %s24
      %p38 = scmp.eq.s32.totalorder %s16, 1
      %p39 = por %p37, %p38
      %p41 = scmp.ne.s32.totalorder %s24, %s40
      %p42 = scmp.eq.s32.totalorder %s16, 0
      %p43 = por %p41, %p42
      %s44 = ssub.s32 %s10, %s17
      %p45 = scmp.eq.s32.totalorder %s44, 0
      %s47 = sadd.s32 %s46, 1
      %s48 = scalar_select %p45, %s46, %s47
      %p51 = pneg %p45
      %p52 = scmp.eq.s32.totalorder %s10, 1
      %p53 = por %p51, %p52
      %p54 = scmp.ne.s32.totalorder %s46, %s49
      %p55 = scmp.eq.s32.totalorder %s10, 0
      %p56 = por %p54, %p55
      %p57 = scmp.ne.s32.totalorder %s46, %s49
      %p58 = scmp.eq.s32.totalorder %s15, 1
      %p59 = por %p57, %p58
      %p60 = scmp.ne.s32.totalorder %s49, %s50
      %p61 = scmp.eq.s32.totalorder %s15, 0
      %p62 = por %p60, %p61
      %p63 = scmp.ne.s32.totalorder %s49, %s50
      %p64 = scmp.eq.s32.totalorder %s16, 1
      %p65 = por %p63, %p64
      %p67 = scmp.ne.s32.totalorder %s50, %s66
      %p68 = scmp.eq.s32.totalorder %s16, 0
      %p69 = por %p67, %p68
      %p70 = scmp.le.s32.totalorder 1, %s10
      %p71 = scmp.lt.s32.totalorder %s10, 3
      %p72 = pnand %p70, %p71
      %p73 = pneg %p72
      // Predicated region
      $region9: #{tpu_custom_call.1} parent=5 // pred_check
        _
      $region10: #{tpu_custom_call.1} parent=5 // pred_check_branch
        %75 = sbr.rel (%p72) target = $region12
      $region11: #{tpu_custom_call.1} parent=5 // pred_region
        %s76 = ssub.s32 %s10, 1
      $region12: #{tpu_custom_call.1} parent=5 // pred_fallthru
        _
      %p77 = scmp.lt.s32.totalorder %s10, 2
      // Predicated region
      $region13: #{tpu_custom_call.1} parent=5 // pred_check
        %p78 = pneg %p77
      $region14: #{tpu_custom_call.1} parent=5 // pred_check_branch
        %80 = sbr.rel (%p78) target = $region16
      $region15: #{tpu_custom_call.1} parent=5 // pred_region
        // Predicated region
        $region17: #{tpu_custom_call.1} parent=15 // pred_check
          %p81 = pneg %p30
        $region18: #{tpu_custom_call.1} parent=15 // pred_check_branch
          %83 = sbr.rel (%p81) target = $region20
        $region19: #{tpu_custom_call.1} parent=15 // pred_region
          %s84 = sand.u32 %s20, 1
          %s85 = scalar_lea.sflag [#allocation3], %s84
          %s86 = sand.u32 %s20, 1
          %s87 = smul.addr %s86, 64
          %s88 = scalar_lea.vmem [#allocation2], %s87
          %s89 = smul.u32 4, %s10
          %s91 = ssub.s32 1024, 1024
          %92 = vsyncadd %s85, %s91
          %s93 = smul.addr %s89, 2
          %s94 = smul.addr %s93, 128
          %s95 = scalar_lea.hbm %s0, %s94
          %s96 = sshll.u32 %s88, 4
          %s97 = int_to_ptr.vmem [resolvable:$true] %s96
          %102 = dma.hbm_to_vmem [thread:$0]  %s95, 1024, %s97, %s85, 128, 128, 8
        $region20: #{tpu_custom_call.1} parent=15 // pred_fallthru
          _
      $region16: #{tpu_custom_call.1} parent=5 // pred_fallthru
        _
      %p103 = scmp.le.s32.totalorder 1, %s10
      %p104 = scmp.lt.s32.totalorder %s10, 3
      %p105 = pnand %p103, %p104
      %p106 = pneg %p105
      // Predicated region
      $region21: #{tpu_custom_call.1} parent=5 // pred_check
        _
      $region22: #{tpu_custom_call.1} parent=5 // pred_check_branch
        %108 = sbr.rel (%p105) target = $region24
      $region23: #{tpu_custom_call.1} parent=5 // pred_region
        %s109 = ssub.s32 %s10, 1
        %s110 = sand.u32 %s23, 1
        %s111 = scalar_lea.sflag [#allocation3], %s110
        %s112 = sand.u32 %s23, 1
        %s113 = smul.addr %s112, 64
        %s114 = scalar_lea.vmem [#allocation2], %s113
        // Predicated region
        $region25: #{tpu_custom_call.1} parent=23 // pred_check
          %p115 = pneg %p36
        $region26: #{tpu_custom_call.1} parent=23 // pred_check_branch
          %117 = sbr.rel (%p115) target = $region28
        $region27: #{tpu_custom_call.1} parent=23 // pred_region
          %118 = dma.done %s111, 1024
        $region28: #{tpu_custom_call.1} parent=23 // pred_fallthru
          _
        %s119 = sand.u32 %s23, 1
        %s120 = scalar_lea.sflag [#allocation3], %s119
        %s121 = sand.u32 %s23, 1
        %s122 = smul.addr %s121, 64
        %s123 = scalar_lea.vmem [#allocation2], %s122
        %p124 = pneg %p36
        %p125 = pneg %p33
        %p126 = pneg %p62
        %p127 = pneg %p59
        %s128 = smul.u32 4, %s15
        %p129 = scmp.lt.s32.totalorder %s128, 7
        %s130 = scalar_select %p129, %s128, 7
        %s131 = smul.addr %s130, 3
        %s132 = smul.addr %s131, 8
        %s133 = scalar_lea.vmem %s1, %s132
        %s134 = smul.u32 4, %s15
        %s135 = smul.u32 4, %s15
        %p136 = scmp.lt.s32.totalorder %s135, 7
        %s137 = scalar_select %p136, %s135, 7
        %s138 = smul.addr %s137, 3
        %s139 = smul.addr %s138, 8
        %s140 = scalar_lea.vmem %s1, %s139
        %s141 = smul.u32 4, %s15
        %vm142 = vcmask 154624
        %143 = vst.msk [vmem:[%s140] sm:$0xff] %vm142, 1.5
        %144 = vst.msk [vmem:[%s140 + $0x8] sm:$0xff] %vm142, 1.5
        %vm145 = vcmask 150528
        %146 = vst.msk [vmem:[%s140 + $0x10] sm:$0xf] %vm145, 1.5
        %147 = vst.msk [vmem:[%s140 + $0x18] sm:$0xff] %vm142, 1.5
        %148 = vst.msk [vmem:[%s140 + $0x20] sm:$0xff] %vm142, 1.5
        %149 = vst.msk [vmem:[%s140 + $0x28] sm:$0xf] %vm145, 1.5
        %150 = vst.msk [vmem:[%s140 + $0x30] sm:$0xff] %vm142, 1.5
        %151 = vst.msk [vmem:[%s140 + $0x38] sm:$0xff] %vm142, 1.5
        %152 = vst.msk [vmem:[%s140 + $0x40] sm:$0xf] %vm145, 1.5
        %153 = vst.msk [vmem:[%s140 + $0x48] sm:$0xff] %vm142, 1.5
        %154 = vst.msk [vmem:[%s140 + $0x50] sm:$0xff] %vm142, 1.5
        %155 = vst.msk [vmem:[%s140 + $0x58] sm:$0xf] %vm145, 1.5
        %v156 = vld [vmem:[%s114] sm:$0xff]
        %v157 = vld [vmem:[%s114 + $0x8] sm:$0xff]
        %v158 = vld [vmem:[%s114 + $0x10] sm:$0xff]
        %v159 = vld [vmem:[%s114 + $0x18] sm:$0xff]
        %v160 = vld [vmem:[%s114 + $0x20] sm:$0xff]
        %v161 = vld [vmem:[%s114 + $0x28] sm:$0xff]
        %v162 = vld [vmem:[%s114 + $0x30] sm:$0xff]
        %v163 = vld [vmem:[%s114 + $0x38] sm:$0xff]
        %172 = vrot.lane.b32.xlu0 %v156, 1
        %v173 = vpop.permute.xlu0 %172
        %174 = vrot.lane.b32.xlu0 %v157, 1
        %v175 = vpop.permute.xlu0 %174
        %176 = vrot.lane.b32.xlu0 %v158, 1
        %v177 = vpop.permute.xlu0 %176
        %178 = vrot.lane.b32.xlu0 %v159, 1
        %v179 = vpop.permute.xlu0 %178
        %180 = vrot.lane.b32.xlu0 %v160, 1
        %v181 = vpop.permute.xlu0 %180
        %182 = vrot.lane.b32.xlu0 %v161, 1
        %v183 = vpop.permute.xlu0 %182
        %184 = vrot.lane.b32.xlu0 %v162, 1
        %v185 = vpop.permute.xlu0 %184
        %186 = vrot.lane.b32.xlu0 %v163, 1
        %v187 = vpop.permute.xlu0 %186
        %vm196 = vcmask 138248
        %197 = vst.msk [vmem:[%s140 + $0x3] sm:$0xff] %vm196, %v173
        %198 = vst.msk [vmem:[%s140 + $0xb] sm:$0xff] %vm196, %v175
        %199 = vst.msk [vmem:[%s140 + $0x1b] sm:$0xff] %vm196, %v177
        %200 = vst.msk [vmem:[%s140 + $0x23] sm:$0xff] %vm196, %v179
        %201 = vst.msk [vmem:[%s140 + $0x33] sm:$0xff] %vm196, %v181
        %202 = vst.msk [vmem:[%s140 + $0x3b] sm:$0xff] %vm196, %v183
        %203 = vst.msk [vmem:[%s140 + $0x4b] sm:$0xff] %vm196, %v185
        %204 = vst.msk [vmem:[%s140 + $0x53] sm:$0xff] %vm196, %v187
        %s205 = smul.u32 4, %s15
        %p206 = scmp.lt.s32.totalorder %s205, 7
        %s207 = scalar_select %p206, %s205, 7
        %s208 = smul.addr %s207, 3
        %s209 = smul.addr %s208, 8
        %s210 = scalar_lea.vmem %s1, %s209
        // Predicated region
        $region29: #{tpu_custom_call.1} parent=23 // pred_check
          %p211 = pneg %p59
        $region30: #{tpu_custom_call.1} parent=23 // pred_check_branch
          %213 = sbr.rel (%p211) target = $region32
        $region31: #{tpu_custom_call.1} parent=23 // pred_region
          %s214 = smul.u32 4, %s15
        $region32: #{tpu_custom_call.1} parent=23 // pred_fallthru
          _
      $region24: #{tpu_custom_call.1} parent=5 // pred_fallthru
        _
      %p215 = scmp.le.s32.totalorder 2, %s10
      // Predicated region
      $region33: #{tpu_custom_call.1} parent=5 // pred_check
        %p216 = pneg %p215
      $region34: #{tpu_custom_call.1} parent=5 // pred_check_branch
        %218 = sbr.rel (%p216) target = $region36
      $region35: #{tpu_custom_call.1} parent=5 // pred_region
        %s219 = ssub.s32 %s10, 2
        // Predicated region
        $region37: #{tpu_custom_call.1} parent=35 // pred_check
          %p220 = pneg %p65
        $region38: #{tpu_custom_call.1} parent=35 // pred_check_branch
          %222 = sbr.rel (%p220) target = $region40
        $region39: #{tpu_custom_call.1} parent=35 // pred_region
          %s223 = smul.u32 4, %s16
          %p224 = scmp.lt.s32.totalorder %s223, 7
          %s225 = scalar_select %p224, %s223, 7
          %s226 = smul.addr %s225, 3
          %s227 = smul.addr %s226, 8
          %s228 = scalar_lea.vmem %s1, %s227
        $region40: #{tpu_custom_call.1} parent=35 // pred_fallthru
          _
      $region36: #{tpu_custom_call.1} parent=5 // pred_fallthru
        _
    $region6: #{tpu_custom_call.1} parent=1 // loop_footer
      %s14 = sadd.s32 1, %s10
    $region7: #{tpu_custom_call.1} parent=1 // loop_footer_branch
      %9 = sbr.rel target = $region3
    $region8: #{tpu_custom_call.1} parent=1 // loop_exit
      _
    %229 = vsyncpa [#allocation3], 1
    %s230 = scalar_lea.sflag [#allocation3], 1
    %231 = vsyncpa %s230, 1

</llo_original>
